<compile_context>
chip_gen: v5e
topology: v5e:2x2
jax: 0.10.0
libtpu: 0.0.40
codegen_flags: <defaults>
</compile_context>

<pallas_src>
import jax
import jax.numpy as jnp
from jax.experimental import pallas as pl
from jax.experimental.pallas import tpu as pltpu


def _round_up(x: int, m: int) -> int:
    return ((x + m - 1) // m) * m


def _cdiv(x: int, m: int) -> int:
    return (x + m - 1) // m


def _sublane(dtype) -> int:
    itemsize = jnp.dtype(dtype).itemsize
    if itemsize >= 4:
        return 8
    if itemsize == 2:
        return 16
    return 32


def _combiner_fused_kernel(first_ref, second_ref, w1t_ref, w2t_ref, b_ref, out_ref):
    # first_linear=True : tanh(first @ W1^T + second @ W2^T + b)
    # Two MXU pushes, one f32 accumulator; weights/bias stay resident in VMEM.
    acc = jnp.dot(first_ref[...], w1t_ref[...], preferred_element_type=jnp.float32)
    acc = acc + jnp.dot(second_ref[...], w2t_ref[...], preferred_element_type=jnp.float32)
    out_ref[...] = jnp.tanh(acc + b_ref[...].astype(jnp.float32)).astype(out_ref.dtype)


def _combiner_identity_kernel(first_ref, second_ref, w2t_ref, b_ref, out_ref):
    # first_linear=None : tanh(first + second @ W2^T + b); no FxF matmul, no eye.
    acc = jnp.dot(second_ref[...], w2t_ref[...], preferred_element_type=jnp.float32)
    out_ref[...] = jnp.tanh(
        first_ref[...].astype(jnp.float32) + acc + b_ref[...].astype(jnp.float32)
    ).astype(out_ref.dtype)


def prepare_combiner_params(w1, w2, b2, *, first_linear=True, param_dtype=None):
    """One-time parameter prep (outside the hot path).

    w1: [F, F] PyTorch Linear layout [out, in] (ignored if first_linear=False)
    w2: [F, S] PyTorch Linear layout [out, in]
    b2: [F]
    param_dtype: optionally cast weights (e.g. jnp.bfloat16 to halve weight traffic).
    """
    F = w2.shape[0]
    if param_dtype is not None:
        w2 = w2.astype(param_dtype)
        if w1 is not None:
            w1 = w1.astype(param_dtype)
    b_row = b2.reshape(1, F).astype(jnp.float32)  # bias is added in f32 in-kernel
    if first_linear:
        return {"first_linear": True, "w1t": w1.T, "w2t": w2.T, "b": b_row}
    return {"first_linear": False, "w2t": w2.T, "b": b_row}


def combiner_forward(first, second, params, *, tm=None):
    """first: [B, F], second: [B, S]; params from prepare_combiner_params."""
    B, F = first.shape
    S = second.shape[1]
    out_dtype = first.dtype
    act_isz = jnp.dtype(first.dtype).itemsize
    sub = max(_sublane(first.dtype), _sublane(second.dtype))

    # Batch tile: as large as possible (per-grid-step overhead ~0.35 us dominates
    # small tiles), dtype-aware sublane rounding, and >=2 blocks for big batches
    # so the "parallel" axis shards across v7x's two TensorCores.
    CAP = 4096  # f32 worst case: 2 * tm * (2F + S) * 4 ~ 2.6 MiB << 64 MiB (v7x VMEM)
    if tm is None:
        if B <= 1024:
            tm = B  # single full-batch block; full-extent block dims are always legal
        elif B <= 2 * CAP:
            tm = _round_up(_cdiv(B, 2), sub)  # exactly 2 blocks -> megacore sharding
        else:
            tm = CAP
    else:
        tm = _round_up(tm, sub)
    grid = (_cdiv(B, tm),)  # partial last block: OOB reads padded, OOB writes dropped

    b_row = params["b"]
    w2t = params["w2t"]
    w_isz = jnp.dtype(w2t.dtype).itemsize
    first_linear = params["first_linear"]

    first_spec = pl.BlockSpec((tm, F), lambda i: (i, 0))
    second_spec = pl.BlockSpec((tm, S), lambda i: (i, 0))
    bias_spec = pl.BlockSpec((1, F), lambda i: (0, 0))
    out_spec = pl.BlockSpec((tm, F), lambda i: (i, 0))
    out_shape = jax.ShapeDtypeStruct((B, F), out_dtype)

    # Double-buffered activation/output tiles + resident weights/bias (x2 margin).
    w_elems = (F * F if first_linear else 0) + S * F
    vmem_need = 2 * tm * (2 * F + S) * act_isz + 2 * (w_elems * w_isz + F * 4)
    vmem_limit = int(min(64 * 2**20, max(4 * vmem_need, 1 << 20)))
    cparams = pltpu.CompilerParams(
        dimension_semantics=("parallel",),  # batch axis shards across TCs (v7x)
        vmem_limit_bytes=vmem_limit,
    )

    bytes_accessed = int(
        first.size * jnp.dtype(first.dtype).itemsize
        + second.size * jnp.dtype(second.dtype).itemsize
        + w_elems * w_isz
        + b_row.size * 4
        + B * F * jnp.dtype(out_dtype).itemsize
    )

    if first_linear:
        cost = pl.CostEstimate(
            flops=int(2 * B * (F + S) * F),
            transcendentals=int(B * F),
            bytes_accessed=bytes_accessed,
        )
        out = pl.pallas_call(
            _combiner_fused_kernel,
            out_shape=out_shape,
            grid=grid,
            in_specs=[
                first_spec,                                  # [tm, F] batch-tiled
                second_spec,                                 # [tm, S] batch-tiled
                pl.BlockSpec((F, F), lambda i: (0, 0)),      # W1^T resident
                pl.BlockSpec((S, F), lambda i: (0, 0)),      # W2^T resident
                bias_spec,                                   # bias resident
            ],
            out_specs=out_spec,
            compiler_params=cparams,
            cost_estimate=cost,
        )(first, second, params["w1t"], w2t, b_row)
    else:
        cost = pl.CostEstimate(
            flops=int(2 * B * S * F + B * F),
            transcendentals=int(B * F),
            bytes_accessed=bytes_accessed,
        )
        out = pl.pallas_call(
            _combiner_identity_kernel,
            out_shape=out_shape,
            grid=grid,
            in_specs=[
                first_spec,
                second_spec,
                pl.BlockSpec((S, F), lambda i: (0, 0)),      # W2^T resident
                bias_spec,
            ],
            out_specs=out_spec,
            compiler_params=cparams,
            cost_estimate=cost,
        )(first, second, w2t, b_row)

    return out


if __name__ == "__main__":
    # Small shapes: batch=8, first_size=32, second_size=16
    B, FIRST, SECOND = 8, 32, 16
    key = jax.random.PRNGKey(0)
    k_first, k_second, k_w1, k_w2, k_b2 = jax.random.split(key, 5)

    first = jax.random.normal(k_first, (B, FIRST), dtype=jnp.float32)
    second = jax.random.normal(k_second, (B, SECOND), dtype=jnp.float32)

    # Deterministic synthetic parameters (PyTorch Linear weight layout [out, in]).
    w1 = 0.1 * jax.random.normal(k_w1, (FIRST, FIRST), dtype=jnp.float32)
    w2 = 0.1 * jax.random.normal(k_w2, (FIRST, SECOND), dtype=jnp.float32)
    b2 = 0.1 * jax.random.normal(k_b2, (FIRST,), dtype=jnp.float32)

    # Path 1: first_linear=True -> tanh(first @ W1^T + second @ W2^T + b)
    params = prepare_combiner_params(w1, w2, b2, first_linear=True)
    out = combiner_forward(first, second, params)
    jax.block_until_ready(out)
    ref = jnp.tanh(first @ w1.T + second @ w2.T + b2)
    assert out.shape == (B, FIRST)
    assert jnp.allclose(out, ref, atol=1e-5, rtol=1e-5)

    # Path 2: first_linear=None -> tanh(first + second @ W2^T + b)
    params_id = prepare_combiner_params(None, w2, b2, first_linear=False)
    out_id = combiner_forward(first, second, params_id)
    jax.block_until_ready(out_id)
    ref_id = jnp.tanh(first + second @ w2.T + b2)
    assert out_id.shape == (B, FIRST)
    assert jnp.allclose(out_id, ref_id, atol=1e-5, rtol=1e-5)

    # Path 3: bf16 streaming (halves HBM traffic); accumulation + tanh stay f32.
    params_bf = prepare_combiner_params(w1, w2, b2, first_linear=True,
                                        param_dtype=jnp.bfloat16)
    first_bf = first.astype(jnp.bfloat16)
    second_bf = second.astype(jnp.bfloat16)
    out_bf = combiner_forward(first_bf, second_bf, params_bf)
    jax.block_until_ready(out_bf)
    w1_bf32 = w1.astype(jnp.bfloat16).astype(jnp.float32)
    w2_bf32 = w2.astype(jnp.bfloat16).astype(jnp.float32)
    ref_bf = jnp.tanh(
        first_bf.astype(jnp.float32) @ w1_bf32.T
        + second_bf.astype(jnp.float32) @ w2_bf32.T
        + b2
    )
    assert out_bf.shape == (B, FIRST)
    assert jnp.allclose(out_bf.astype(jnp.float32), ref_bf, atol=2e-2, rtol=2e-2)

    print("KERNEL_OK")
</pallas_src>

<mosaic_0001>
module attributes {stable_mosaic.version = 11 : i64} {
  func.func @_combiner_fused_kernel(%arg0: i32, %arg1: memref<8x32xf32, #tpu.memory_space<vmem>>, %arg2: memref<8x16xf32, #tpu.memory_space<vmem>>, %arg3: memref<32x32xf32, #tpu.memory_space<vmem>>, %arg4: memref<16x32xf32, #tpu.memory_space<vmem>>, %arg5: memref<1x32xf32, #tpu.memory_space<vmem>>, %arg6: memref<8x32xf32, #tpu.memory_space<vmem>>) attributes {dimension_semantics = [#tpu.dimension_semantics<parallel>], iteration_bounds = array<i64: 1>, scalar_prefetch = 0 : i64, scratch_operands = 0 : i64, tpu.core_type = #tpu.core_type<tc>, window_params = [{transform_indices = @transform_0, window_bounds = array<i64: 8, 32>}, {transform_indices = @transform_1, window_bounds = array<i64: 8, 16>}, {pipeline_mode = #tpu.pipeline_mode<synchronous>, transform_indices = @transform_2, window_bounds = array<i64: 32, 32>}, {pipeline_mode = #tpu.pipeline_mode<synchronous>, transform_indices = @transform_3, window_bounds = array<i64: 16, 32>}, {pipeline_mode = #tpu.pipeline_mode<synchronous>, transform_indices = @transform_4, window_bounds = array<i64: 1, 32>}, {transform_indices = @transform_5, window_bounds = array<i64: 8, 32>}]} {
    %c0 = arith.constant 0 : index
    %c0_0 = arith.constant 0 : index
    %0 = vector.load %arg1[%c0, %c0_0] : memref<8x32xf32, #tpu.memory_space<vmem>>, vector<8x32xf32>
    %c0_1 = arith.constant 0 : index
    %c0_2 = arith.constant 0 : index
    %1 = vector.load %arg3[%c0_1, %c0_2] : memref<32x32xf32, #tpu.memory_space<vmem>>, vector<32x32xf32>
    %cst = arith.constant dense<0.000000e+00> : vector<8x32xf32>
    %2 = tpu.matmul %0, %1, %cst {dimension_numbers = #tpu.dot_dimension_numbers<[1], [0], [0], [1], [0, 0, 1, 1], [], []>} : vector<8x32xf32>, vector<32x32xf32>, vector<8x32xf32> -> vector<8x32xf32>
    %c0_3 = arith.constant 0 : index
    %c0_4 = arith.constant 0 : index
    %3 = vector.load %arg2[%c0_3, %c0_4] : memref<8x16xf32, #tpu.memory_space<vmem>>, vector<8x16xf32>
    %c0_5 = arith.constant 0 : index
    %c0_6 = arith.constant 0 : index
    %4 = vector.load %arg4[%c0_5, %c0_6] : memref<16x32xf32, #tpu.memory_space<vmem>>, vector<16x32xf32>
    %cst_7 = arith.constant dense<0.000000e+00> : vector<8x32xf32>
    %5 = tpu.matmul %3, %4, %cst_7 {dimension_numbers = #tpu.dot_dimension_numbers<[1], [0], [0], [1], [0, 0, 1, 1], [], []>} : vector<8x16xf32>, vector<16x32xf32>, vector<8x32xf32> -> vector<8x32xf32>
    %6 = arith.addf %2, %5 : vector<8x32xf32>
    %c0_8 = arith.constant 0 : index
    %c0_9 = arith.constant 0 : index
    %7 = vector.load %arg5[%c0_8, %c0_9] : memref<1x32xf32, #tpu.memory_space<vmem>>, vector<1x32xf32>
    %8 = vector.broadcast %7 : vector<1x32xf32> to vector<8x32xf32>
    %9 = arith.addf %6, %8 : vector<8x32xf32>
    %10 = math.tanh %9 : vector<8x32xf32>
    %c0_10 = arith.constant 0 : index
    %c0_11 = arith.constant 0 : index
    %11 = vector.load %arg6[%c0_10, %c0_11] : memref<8x32xf32, #tpu.memory_space<vmem>>, vector<8x32xf32>
    tpu.vector_store %arg6[%c0_10, %c0_11], %10 {strides = array<i32>} : memref<8x32xf32, #tpu.memory_space<vmem>>, vector<8x32xf32>,
    return
  }
  func.func @transform_0(%arg0: i32) -> (i32, i32) {
    %c0_i32 = arith.constant 0 : i32
    %c0_i32_0 = arith.constant 0 : i32
    return %arg0, %c0_i32 : i32, i32
  }
  func.func @transform_1(%arg0: i32) -> (i32, i32) {
    %c0_i32 = arith.constant 0 : i32
    %c0_i32_0 = arith.constant 0 : i32
    return %arg0, %c0_i32 : i32, i32
  }
  func.func @transform_2(%arg0: i32) -> (i32, i32) {
    %c0_i32 = arith.constant 0 : i32
    %c0_i32_0 = arith.constant 0 : i32
    %c0_i32_1 = arith.constant 0 : i32
    return %c0_i32, %c0_i32_0 : i32, i32
  }
  func.func @transform_3(%arg0: i32) -> (i32, i32) {
    %c0_i32 = arith.constant 0 : i32
    %c0_i32_0 = arith.constant 0 : i32
    %c0_i32_1 = arith.constant 0 : i32
    return %c0_i32, %c0_i32_0 : i32, i32
  }
  func.func @transform_4(%arg0: i32) -> (i32, i32) {
    %c0_i32 = arith.constant 0 : i32
    %c0_i32_0 = arith.constant 0 : i32
    %c0_i32_1 = arith.constant 0 : i32
    return %c0_i32, %c0_i32_0 : i32, i32
  }
  func.func @transform_5(%arg0: i32) -> (i32, i32) {
    %c0_i32 = arith.constant 0 : i32
    %c0_i32_0 = arith.constant 0 : i32
    return %arg0, %c0_i32 : i32, i32
  }
}

</mosaic_0001>

<llo_original>
// kernel: tpu_custom_call.1
$region0: #{tpu_custom_call.1}
  #allocation0 [shape = 'u32[]', space=smem, size = 0x4, offset = 0x4, fixed_abs, tag = 'smem constant byte address 0x4 - core index']
  #allocation1 [shape = 'u32[72,128]{1,0:T(1,128)}', space=vmem, size = 0x9000, scoped, tag = 'internal scratch']
  %s0 = inlined_call_operand.hbm [shape: f32[8,32], index: 0, kind: input, shape index: {}]
  %s1 = inlined_call_operand.hbm [shape: f32[8,16], index: 1, kind: input, shape index: {}]
  %s2 = inlined_call_operand.hbm [shape: f32[32,32], index: 2, kind: input, shape index: {}]
  %s3 = inlined_call_operand.hbm [shape: f32[16,32], index: 3, kind: input, shape index: {}]
  %s4 = inlined_call_operand.vmem [shape: f32[1,32], index: 4, kind: input, shape index: {}]
  %s5 = inlined_call_operand.hbm [shape: f32[8,32], index: 5, kind: output, shape index: {}]
  %s6 = sld [smem:[#allocation0]]
  $region46: #{tpu_custom_call.1} parent=0
    _
  %s8 = ssub.s32 1, %s6
  %s9 = scalar_select 0, %s8, %s6
  $region1: #{tpu_custom_call.1} parent=0
    #allocation2 [shape = 'u8[4096]{0}', space=vmem, size = 0x1000, scoped, tag = 'input window, operand 0, single buffered']
    #allocation3 [shape = 's32[1]{0}', space=sflag, size = 0x4, scoped, tag = 'scoped memory for tpu_custom_call.1']
    #allocation4 [shape = 's32[1]{0}', space=sflag, size = 0x4, scoped, tag = 'scoped memory for tpu_custom_call.1']
    #allocation5 [shape = 'u8[4096]{0}', space=vmem, size = 0x1000, scoped, tag = 'input window, operand 1, single buffered']
    #allocation6 [shape = 's32[1]{0}', space=sflag, size = 0x4, scoped, tag = 'scoped memory for tpu_custom_call.1']
    #allocation7 [shape = 'u8[16384]{0}', space=vmem, size = 0x4000, scoped, tag = 'input window, operand 2, single buffered']
    #allocation8 [shape = 'u8[8192]{0}', space=vmem, size = 0x2000, scoped, tag = 'input window, operand 3, single buffered']
    #allocation9 [shape = 's32[1]{0}', space=sflag, size = 0x4, scoped, tag = 'scoped memory for tpu_custom_call.1']
    #allocation10 [shape = 'u8[4096]{0}', space=vmem, size = 0x1000, scoped, tag = 'output window, operand 0, single buffered']
    %10 = vsyncpa [#allocation3], 0
    %11 = vsyncpa [#allocation6], 0
    %12 = vsyncpa [#allocation9], 0
    %13 = vsyncpa [#allocation4], 0
    // Predicated region
    $region2: #{tpu_custom_call.1} parent=1 // pred_check
      _
    $region3: #{tpu_custom_call.1} parent=1 // pred_check_branch
      %15 = sbr.rel (0) target = $region5
    $region4: #{tpu_custom_call.1} parent=1 // pred_region
      %17 = vsyncadd [#allocation3], 0
      %s19 = sshll.u32 %s0, 4
      %s20 = int_to_ptr.hbm [resolvable:$true] %s19
      %s21 = sshll.u32 [#allocation2], 4
      %s22 = int_to_ptr.vmem [resolvable:$true] %s21
      %24 = dma.hbm_to_vmem [thread:$0]  %s20, 128, %s22, [#allocation3]
    $region5: #{tpu_custom_call.1} parent=1 // pred_fallthru
      _
    // Predicated region
    $region6: #{tpu_custom_call.1} parent=1 // pred_check
      _
    $region7: #{tpu_custom_call.1} parent=1 // pred_check_branch
      %26 = sbr.rel (0) target = $region9
    $region8: #{tpu_custom_call.1} parent=1 // pred_region
      %28 = vsyncadd [#allocation6], 0
      %s30 = sshll.u32 %s1, 4
      %s31 = int_to_ptr.hbm [resolvable:$true] %s30
      %s32 = sshll.u32 [#allocation5], 4
      %s33 = int_to_ptr.vmem [resolvable:$true] %s32
      %35 = dma.hbm_to_vmem [thread:$0]  %s31, 128, %s33, [#allocation6]
    $region9: #{tpu_custom_call.1} parent=1 // pred_fallthru
      _
    // Predicated region
    $region10: #{tpu_custom_call.1} parent=1 // pred_check
      _
    $region11: #{tpu_custom_call.1} parent=1 // pred_check_branch
      %37 = sbr.rel (0) target = $region13
    $region12: #{tpu_custom_call.1} parent=1 // pred_region
      %39 = vsyncadd [#allocation6], 0
      %s40 = sshll.u32 %s2, 4
      %s41 = int_to_ptr.hbm [resolvable:$true] %s40
      %s42 = sshll.u32 [#allocation7], 4
      %s43 = int_to_ptr.vmem [resolvable:$true] %s42
      %48 = dma.hbm_to_vmem [thread:$0]  %s41, 512, %s43, [#allocation6], 128, 128, 8
    $region13: #{tpu_custom_call.1} parent=1 // pred_fallthru
      _
    // Predicated region
    $region14: #{tpu_custom_call.1} parent=1 // pred_check
      _
    $region15: #{tpu_custom_call.1} parent=1 // pred_check_branch
      %50 = sbr.rel (0) target = $region17
    $region16: #{tpu_custom_call.1} parent=1 // pred_region
      %52 = vsyncadd [#allocation9], 0
      %s53 = sshll.u32 %s3, 4
      %s54 = int_to_ptr.hbm [resolvable:$true] %s53
      %s55 = sshll.u32 [#allocation8], 4
      %s56 = int_to_ptr.vmem [resolvable:$true] %s55
      %61 = dma.hbm_to_vmem [thread:$0]  %s54, 256, %s56, [#allocation9], 128, 128, 8
    $region17: #{tpu_custom_call.1} parent=1 // pred_fallthru
      _
    // Predicated region
    $region18: #{tpu_custom_call.1} parent=1 // pred_check
      _
    $region19: #{tpu_custom_call.1} parent=1 // pred_check_branch
      %63 = sbr.rel (0) target = $region21
    $region20: #{tpu_custom_call.1} parent=1 // pred_region
      _
    $region21: #{tpu_custom_call.1} parent=1 // pred_fallthru
      _
    // Predicated region
    $region22: #{tpu_custom_call.1} parent=1 // pred_check
      _
    $region23: #{tpu_custom_call.1} parent=1 // pred_check_branch
      %65 = sbr.rel (0) target = $region25
    $region24: #{tpu_custom_call.1} parent=1 // pred_region
      %67 = dma.done [#allocation3], 128
    $region25: #{tpu_custom_call.1} parent=1 // pred_fallthru
      _
    // Predicated region
    $region26: #{tpu_custom_call.1} parent=1 // pred_check
      _
    $region27: #{tpu_custom_call.1} parent=1 // pred_check_branch
      %69 = sbr.rel (0) target = $region29
    $region28: #{tpu_custom_call.1} parent=1 // pred_region
      %71 = dma.done [#allocation6], 128
    $region29: #{tpu_custom_call.1} parent=1 // pred_fallthru
      _
    // Predicated region
    $region30: #{tpu_custom_call.1} parent=1 // pred_check
      _
    $region31: #{tpu_custom_call.1} parent=1 // pred_check_branch
      %73 = sbr.rel (0) target = $region33
    $region32: #{tpu_custom_call.1} parent=1 // pred_region
      %75 = dma.done [#allocation6], 512
    $region33: #{tpu_custom_call.1} parent=1 // pred_fallthru
      _
    // Predicated region
    $region34: #{tpu_custom_call.1} parent=1 // pred_check
      _
    $region35: #{tpu_custom_call.1} parent=1 // pred_check_branch
      %77 = sbr.rel (0) target = $region37
    $region36: #{tpu_custom_call.1} parent=1 // pred_region
      %79 = dma.done [#allocation9], 256
    $region37: #{tpu_custom_call.1} parent=1 // pred_fallthru
      _
    %v80 = vld [vmem:[#allocation2] sm:$0xff]
    %v81 = vld [vmem:[#allocation7] sm:$0xff]
    %v82 = vld [vmem:[#allocation7 + $0x8] sm:$0xff]
    %v83 = vld [vmem:[#allocation7 + $0x10] sm:$0xff]
    %v84 = vld [vmem:[#allocation7 + $0x18] sm:$0xff]
    %v85 = vld [vmem:[#allocation5] sm:$0xff]
    %v86 = vld [vmem:[#allocation8] sm:$0xff]
    %v87 = vld [vmem:[#allocation8 + $0x8] sm:$0xff]
    %vm88 = vcmask 130048
    %v90 = vsel %vm88, %v85, 0
    %92 = vmatpush.msra.mxu0 0.0
    %93 = vmatpush.msra.mxu0 0.0
    %94 = vmatpush.msra.mxu0 0.0
    %95 = vmatpush.msra.mxu0 0.0
    %96 = vmatpush.msra.mxu0 0.0
    %97 = vmatpush.msra.mxu0 0.0
    %98 = vmatpush.msra.mxu0 0.0
    %99 = vmatpush.msra.mxu0 0.0
    %100 = vmatpush.msra.mxu0 0.0
    %101 = vmatpush.msra.mxu0 0.0
    %102 = vmatpush.msra.mxu0 0.0
    %103 = vmatpush.msra.mxu0 0.0
    %104 = vmatpush.msra.mxu0 0.0
    %105 = vmatpush.msra.mxu0 0.0
    %106 = vmatpush.msra.mxu0 %v87
    %107 = vmatpush.msra.mxu0 %v86
    %108 = vmatmul.f32.gmra.mxu0 %v90
    %v109 = vpop.f32.mrf.mxu0
    %v110 = vadd.f32 0.0, %v109
    %111 = vdwg.mxu0
    %vm112 = vcmask 261120
    %v114 = vsel %vm112, %v80, 0
    %116 = vmatpush.msra.mxu0 0.0
    %117 = vmatpush.msra.mxu0 0.0
    %118 = vmatpush.msra.mxu0 0.0
    %119 = vmatpush.msra.mxu0 0.0
    %120 = vmatpush.msra.mxu0 0.0
    %121 = vmatpush.msra.mxu0 0.0
    %122 = vmatpush.msra.mxu0 0.0
    %123 = vmatpush.msra.mxu0 0.0
    %124 = vmatpush.msra.mxu0 0.0
    %125 = vmatpush.msra.mxu0 0.0
    %126 = vmatpush.msra.mxu0 0.0
    %127 = vmatpush.msra.mxu0 0.0
    %128 = vmatpush.msra.mxu0 %v84
    %129 = vmatpush.msra.mxu0 %v83
    %130 = vmatpush.msra.mxu0 %v82
    %131 = vmatpush.msra.mxu0 %v81
    %132 = vmatmul.f32.gmra.mxu0 %v114
    %v133 = vpop.f32.mrf.mxu0
    %v134 = vadd.f32 %v110, %v133
    %135 = vdwg.mxu0
    %v136 = vld [vmem:[%s4] sm:$0x1]
    %v138 = vperm.slane %v136, 0
    %v140 = vadd.f32 %v134, %v138
    %v141 = vtanh.pop %v140
    %142 = vst.msk [vmem:[#allocation10] sm:$0xff] %vm112, %v141
    // Predicated region
    $region38: #{tpu_custom_call.1} parent=1 // pred_check
      _
    $region39: #{tpu_custom_call.1} parent=1 // pred_check_branch
      %144 = sbr.rel (0) target = $region41
    $region40: #{tpu_custom_call.1} parent=1 // pred_region
      %146 = vsyncadd [#allocation4], 0
      %s148 = sshll.u32 [#allocation10], 4
      %s149 = int_to_ptr.vmem [resolvable:$true] %s148
      %s150 = sshll.u32 %s5, 4
      %s151 = int_to_ptr.hbm [resolvable:$true] %s150
      %153 = dma.vmem_to_hbm [thread:$0]  %s149, 128, %s151, [#allocation4]
    $region41: #{tpu_custom_call.1} parent=1 // pred_fallthru
      _
    // Predicated region
    $region42: #{tpu_custom_call.1} parent=1 // pred_check
      _
    $region43: #{tpu_custom_call.1} parent=1 // pred_check_branch
      %155 = sbr.rel (0) target = $region45
    $region44: #{tpu_custom_call.1} parent=1 // pred_region
      %157 = dma.done [#allocation4], 128
    $region45: #{tpu_custom_call.1} parent=1 // pred_fallthru
      _
    %158 = vsyncpa [#allocation3], 1
    %159 = vsyncpa [#allocation6], 1
    %160 = vsyncpa [#allocation9], 1
    %161 = vsyncpa [#allocation4], 1

</llo_original>
